<compile_context>
chip_gen: v7x
topology: tpu7x:2x2x1
jax: 0.10.0
libtpu: 0.0.40
codegen_flags: <defaults>
</compile_context>

<pallas_src>
import jax
import jax.numpy as jnp
from jax.experimental import pallas as pl
from jax.experimental.pallas import tpu as pltpu

IN_FEATURES = 4
OUT_FEATURES = 3
_LANE = 128


def _linear_kernel(w_ref, b_ref, xt_ref, ot_ref):
    """Feature-major linear: ot[o, :] = b[o] + sum_k w[o, k] * xt[k, :].

    w_ref:  [OUT, IN]  f32, SMEM  (scalar reads -> scalar-splat FMAs)
    b_ref:  [OUT]      f32, SMEM
    xt_ref: [IN,  TB]  f32, VMEM  (batch on the lane axis)
    ot_ref: [OUT, TB]  f32, VMEM
    """
    x = xt_ref[...]                                            # [IN, TB]
    for o in range(OUT_FEATURES):
        acc = x[0:1, :] * w_ref[o, 0]
        for k in range(1, IN_FEATURES):
            acc = acc + x[k:k + 1, :] * w_ref[o, k]
        ot_ref[o:o + 1, :] = (acc + b_ref[o]).astype(ot_ref.dtype)


def linear_forward(x, weight, bias, *, batch_tile=131072):
    """nn.Linear(4, 3) forward: x @ weight.T + bias.

    x:      [B, IN]  f32
    weight: [OUT, IN] f32 (PyTorch layout)
    bias:   [OUT]    f32
    returns [B, OUT] f32
    """
    B = x.shape[0]

    # Lane-dense repack: batch onto the 128-lane axis (feature-major), padded
    # up to a whole number of batch tiles. Padding lanes are zeros and get
    # sliced off after the call; HBM traffic only covers the real rows of the
    # contiguous [IN, B] source plus the small pad tail.
    bp = pl.cdiv(max(B, 1), _LANE) * _LANE
    tb = min(batch_tile, bp)
    bp = pl.cdiv(bp, tb) * tb

    xt = jnp.transpose(x)                                      # [IN, B]
    if bp != B:
        xt = jnp.pad(xt, ((0, 0), (0, bp - B)))

    out_t = pl.pallas_call(
        _linear_kernel,
        out_shape=jax.ShapeDtypeStruct((OUT_FEATURES, bp), x.dtype),
        grid=(bp // tb,),
        in_specs=[
            # 12 weights + 3 biases as SMEM scalars (no padded VMEM tiles).
            pl.BlockSpec(memory_space=pltpu.MemorySpace.SMEM),
            pl.BlockSpec(memory_space=pltpu.MemorySpace.SMEM),
            # Feature-major activations, batch tiled along the lane axis.
            pl.BlockSpec((IN_FEATURES, tb), lambda i: (0, i)),
        ],
        out_specs=pl.BlockSpec((OUT_FEATURES, tb), lambda i: (0, i)),
        compiler_params=pltpu.CompilerParams(
            dimension_semantics=("parallel",),   # shards batch over v7x's 2 TCs
            vmem_limit_bytes=40 * 1024 * 1024,   # fits v7x 64 MiB physical VMEM
        ),
    )(weight, bias, xt)

    return jnp.transpose(out_t[:, :B])                         # [B, OUT]


def _ref_forward(x, weight, bias):
    return x @ weight.T + bias


if __name__ == "__main__":
    key = jax.random.PRNGKey(0)
    k_x, k_w, k_b, k_x2 = jax.random.split(key, 4)

    # Deterministic parameter init mimicking nn.Linear's default uniform init.
    bound = 1.0 / (IN_FEATURES ** 0.5)
    weight = jax.random.uniform(
        k_w, (OUT_FEATURES, IN_FEATURES), jnp.float32, -bound, bound)
    bias = jax.random.uniform(
        k_b, (OUT_FEATURES,), jnp.float32, -bound, bound)

    # Small demo batch (module implies [B, 4] inputs).
    B = 8
    x = jax.random.normal(k_x, (B, IN_FEATURES), jnp.float32)
    out = jax.block_until_ready(linear_forward(x, weight, bias))
    ref = _ref_forward(x, weight, bias)
    assert out.shape == (B, OUT_FEATURES), out.shape
    assert jnp.allclose(out, ref, atol=1e-5, rtol=1e-5), (out, ref)

    # Exercise the multi-tile (grid > 1) path with a non-tile-divisible batch.
    B2 = 1000
    x2 = jax.random.normal(k_x2, (B2, IN_FEATURES), jnp.float32)
    out2 = jax.block_until_ready(
        linear_forward(x2, weight, bias, batch_tile=256))
    ref2 = _ref_forward(x2, weight, bias)
    assert out2.shape == (B2, OUT_FEATURES), out2.shape
    assert jnp.allclose(out2, ref2, atol=1e-5, rtol=1e-5)

    print("KERNEL_OK")
</pallas_src>

<mosaic_0001>
module attributes {stable_mosaic.version = 11 : i64} {
  func.func @_linear_kernel(%arg0: i32, %arg1: memref<3x4xf32, #tpu.memory_space<smem>>, %arg2: memref<3xf32, #tpu.memory_space<smem>>, %arg3: memref<4x128xf32, #tpu.memory_space<vmem>>, %arg4: memref<3x128xf32, #tpu.memory_space<vmem>>) attributes {dimension_semantics = [#tpu.dimension_semantics<parallel>], iteration_bounds = array<i64: 1>, scalar_prefetch = 0 : i64, scratch_operands = 0 : i64, tpu.core_type = #tpu.core_type<tc>, window_params = [{transform_indices = @transform_0, window_bounds = array<i64: 3, 4>}, {transform_indices = @transform_1, window_bounds = array<i64: 3>}, {transform_indices = @transform_2, window_bounds = array<i64: 4, 128>}, {transform_indices = @transform_3, window_bounds = array<i64: 3, 128>}]} {
    %c0 = arith.constant 0 : index
    %c0_0 = arith.constant 0 : index
    %0 = vector.load %arg3[%c0, %c0_0] : memref<4x128xf32, #tpu.memory_space<vmem>>, vector<4x128xf32>
    %1 = vector.extract_strided_slice %0 {offsets = [0, 0], sizes = [1, 128], strides = [1, 1]} : vector<4x128xf32> to vector<1x128xf32>
    %c0_1 = arith.constant 0 : index
    %c0_2 = arith.constant 0 : index
    %2 = memref.load %arg1[%c0_1, %c0_2] : memref<3x4xf32, #tpu.memory_space<smem>>
    %3 = vector.broadcast %2 : f32 to vector<1x128xf32>
    %4 = arith.mulf %1, %3 : vector<1x128xf32>
    %5 = vector.extract_strided_slice %0 {offsets = [1, 0], sizes = [1, 128], strides = [1, 1]} : vector<4x128xf32> to vector<1x128xf32>
    %c0_3 = arith.constant 0 : index
    %c1 = arith.constant 1 : index
    %6 = memref.load %arg1[%c0_3, %c1] : memref<3x4xf32, #tpu.memory_space<smem>>
    %7 = vector.broadcast %6 : f32 to vector<1x128xf32>
    %8 = arith.mulf %5, %7 : vector<1x128xf32>
    %9 = arith.addf %4, %8 : vector<1x128xf32>
    %10 = vector.extract_strided_slice %0 {offsets = [2, 0], sizes = [1, 128], strides = [1, 1]} : vector<4x128xf32> to vector<1x128xf32>
    %c0_4 = arith.constant 0 : index
    %c2 = arith.constant 2 : index
    %11 = memref.load %arg1[%c0_4, %c2] : memref<3x4xf32, #tpu.memory_space<smem>>
    %12 = vector.broadcast %11 : f32 to vector<1x128xf32>
    %13 = arith.mulf %10, %12 : vector<1x128xf32>
    %14 = arith.addf %9, %13 : vector<1x128xf32>
    %15 = vector.extract_strided_slice %0 {offsets = [3, 0], sizes = [1, 128], strides = [1, 1]} : vector<4x128xf32> to vector<1x128xf32>
    %c0_5 = arith.constant 0 : index
    %c3 = arith.constant 3 : index
    %16 = memref.load %arg1[%c0_5, %c3] : memref<3x4xf32, #tpu.memory_space<smem>>
    %17 = vector.broadcast %16 : f32 to vector<1x128xf32>
    %18 = arith.mulf %15, %17 : vector<1x128xf32>
    %19 = arith.addf %14, %18 : vector<1x128xf32>
    %c0_6 = arith.constant 0 : index
    %20 = memref.load %arg2[%c0_6] : memref<3xf32, #tpu.memory_space<smem>>
    %21 = vector.broadcast %20 : f32 to vector<1x128xf32>
    %22 = arith.addf %19, %21 : vector<1x128xf32>
    %c0_7 = arith.constant 0 : index
    %c0_8 = arith.constant 0 : index
    %23 = vector.load %arg4[%c0_7, %c0_8] : memref<3x128xf32, #tpu.memory_space<vmem>>, vector<1x128xf32>
    tpu.vector_store %arg4[%c0_7, %c0_8], %22 {strides = array<i32>} : memref<3x128xf32, #tpu.memory_space<vmem>>, vector<1x128xf32>,
    %24 = vector.extract_strided_slice %0 {offsets = [0, 0], sizes = [1, 128], strides = [1, 1]} : vector<4x128xf32> to vector<1x128xf32>
    %c1_9 = arith.constant 1 : index
    %c0_10 = arith.constant 0 : index
    %25 = memref.load %arg1[%c1_9, %c0_10] : memref<3x4xf32, #tpu.memory_space<smem>>
    %26 = vector.broadcast %25 : f32 to vector<1x128xf32>
    %27 = arith.mulf %24, %26 : vector<1x128xf32>
    %28 = vector.extract_strided_slice %0 {offsets = [1, 0], sizes = [1, 128], strides = [1, 1]} : vector<4x128xf32> to vector<1x128xf32>
    %c1_11 = arith.constant 1 : index
    %c1_12 = arith.constant 1 : index
    %29 = memref.load %arg1[%c1_11, %c1_12] : memref<3x4xf32, #tpu.memory_space<smem>>
    %30 = vector.broadcast %29 : f32 to vector<1x128xf32>
    %31 = arith.mulf %28, %30 : vector<1x128xf32>
    %32 = arith.addf %27, %31 : vector<1x128xf32>
    %33 = vector.extract_strided_slice %0 {offsets = [2, 0], sizes = [1, 128], strides = [1, 1]} : vector<4x128xf32> to vector<1x128xf32>
    %c1_13 = arith.constant 1 : index
    %c2_14 = arith.constant 2 : index
    %34 = memref.load %arg1[%c1_13, %c2_14] : memref<3x4xf32, #tpu.memory_space<smem>>
    %35 = vector.broadcast %34 : f32 to vector<1x128xf32>
    %36 = arith.mulf %33, %35 : vector<1x128xf32>
    %37 = arith.addf %32, %36 : vector<1x128xf32>
    %38 = vector.extract_strided_slice %0 {offsets = [3, 0], sizes = [1, 128], strides = [1, 1]} : vector<4x128xf32> to vector<1x128xf32>
    %c1_15 = arith.constant 1 : index
    %c3_16 = arith.constant 3 : index
    %39 = memref.load %arg1[%c1_15, %c3_16] : memref<3x4xf32, #tpu.memory_space<smem>>
    %40 = vector.broadcast %39 : f32 to vector<1x128xf32>
    %41 = arith.mulf %38, %40 : vector<1x128xf32>
    %42 = arith.addf %37, %41 : vector<1x128xf32>
    %c1_17 = arith.constant 1 : index
    %43 = memref.load %arg2[%c1_17] : memref<3xf32, #tpu.memory_space<smem>>
    %44 = vector.broadcast %43 : f32 to vector<1x128xf32>
    %45 = arith.addf %42, %44 : vector<1x128xf32>
    %c1_18 = arith.constant 1 : index
    %c0_19 = arith.constant 0 : index
    %46 = vector.load %arg4[%c1_18, %c0_19] : memref<3x128xf32, #tpu.memory_space<vmem>>, vector<1x128xf32>
    tpu.vector_store %arg4[%c1_18, %c0_19], %45 {strides = array<i32>} : memref<3x128xf32, #tpu.memory_space<vmem>>, vector<1x128xf32>,
    %47 = vector.extract_strided_slice %0 {offsets = [0, 0], sizes = [1, 128], strides = [1, 1]} : vector<4x128xf32> to vector<1x128xf32>
    %c2_20 = arith.constant 2 : index
    %c0_21 = arith.constant 0 : index
    %48 = memref.load %arg1[%c2_20, %c0_21] : memref<3x4xf32, #tpu.memory_space<smem>>
    %49 = vector.broadcast %48 : f32 to vector<1x128xf32>
    %50 = arith.mulf %47, %49 : vector<1x128xf32>
    %51 = vector.extract_strided_slice %0 {offsets = [1, 0], sizes = [1, 128], strides = [1, 1]} : vector<4x128xf32> to vector<1x128xf32>
    %c2_22 = arith.constant 2 : index
    %c1_23 = arith.constant 1 : index
    %52 = memref.load %arg1[%c2_22, %c1_23] : memref<3x4xf32, #tpu.memory_space<smem>>
    %53 = vector.broadcast %52 : f32 to vector<1x128xf32>
    %54 = arith.mulf %51, %53 : vector<1x128xf32>
    %55 = arith.addf %50, %54 : vector<1x128xf32>
    %56 = vector.extract_strided_slice %0 {offsets = [2, 0], sizes = [1, 128], strides = [1, 1]} : vector<4x128xf32> to vector<1x128xf32>
    %c2_24 = arith.constant 2 : index
    %c2_25 = arith.constant 2 : index
    %57 = memref.load %arg1[%c2_24, %c2_25] : memref<3x4xf32, #tpu.memory_space<smem>>
    %58 = vector.broadcast %57 : f32 to vector<1x128xf32>
    %59 = arith.mulf %56, %58 : vector<1x128xf32>
    %60 = arith.addf %55, %59 : vector<1x128xf32>
    %61 = vector.extract_strided_slice %0 {offsets = [3, 0], sizes = [1, 128], strides = [1, 1]} : vector<4x128xf32> to vector<1x128xf32>
    %c2_26 = arith.constant 2 : index
    %c3_27 = arith.constant 3 : index
    %62 = memref.load %arg1[%c2_26, %c3_27] : memref<3x4xf32, #tpu.memory_space<smem>>
    %63 = vector.broadcast %62 : f32 to vector<1x128xf32>
    %64 = arith.mulf %61, %63 : vector<1x128xf32>
    %65 = arith.addf %60, %64 : vector<1x128xf32>
    %c2_28 = arith.constant 2 : index
    %66 = memref.load %arg2[%c2_28] : memref<3xf32, #tpu.memory_space<smem>>
    %67 = vector.broadcast %66 : f32 to vector<1x128xf32>
    %68 = arith.addf %65, %67 : vector<1x128xf32>
    %c2_29 = arith.constant 2 : index
    %c0_30 = arith.constant 0 : index
    %69 = vector.load %arg4[%c2_29, %c0_30] : memref<3x128xf32, #tpu.memory_space<vmem>>, vector<1x128xf32>
    tpu.vector_store %arg4[%c2_29, %c0_30], %68 {strides = array<i32>} : memref<3x128xf32, #tpu.memory_space<vmem>>, vector<1x128xf32>,
    return
  }
  func.func @transform_0(%arg0: i32) -> (i32, i32) {
    %c0_i32 = arith.constant 0 : i32
    %c0_i32_0 = arith.constant 0 : i32
    %c0_i32_1 = arith.constant 0 : i32
    return %c0_i32, %c0_i32_0 : i32, i32
  }
  func.func @transform_1(%arg0: i32) -> i32 {
    %c0_i32 = arith.constant 0 : i32
    %c0_i32_0 = arith.constant 0 : i32
    return %c0_i32 : i32
  }
  func.func @transform_2(%arg0: i32) -> (i32, i32) {
    %c0_i32 = arith.constant 0 : i32
    %c0_i32_0 = arith.constant 0 : i32
    return %c0_i32, %arg0 : i32, i32
  }
  func.func @transform_3(%arg0: i32) -> (i32, i32) {
    %c0_i32 = arith.constant 0 : i32
    %c0_i32_0 = arith.constant 0 : i32
    return %c0_i32, %arg0 : i32, i32
  }
}

</mosaic_0001>

<llo_original>
// kernel: tpu_custom_call.1
$region0: #{tpu_custom_call.1}
  #allocation0 [shape = 'u32[]', space=smem, size = 0x4, offset = 0x4, fixed_abs, tag = 'smem constant byte address 0x4 - core index']
  #allocation1 [shape = 'u32[144,128]{1,0:T(1,128)}', space=vmem, size = 0x12000, scoped, tag = 'internal scratch']
  %s0 = inlined_call_operand.hbm [shape: f32[3,4], index: 0, kind: input, shape index: {}]
  %s1 = inlined_call_operand.vmem [shape: f32[3], index: 1, kind: input, shape index: {}]
  %s2 = inlined_call_operand.vmem [shape: f32[4,128], index: 2, kind: input, shape index: {}]
  %s3 = inlined_call_operand.hbm [shape: f32[3,128], index: 3, kind: output, shape index: {}]
  %s4 = sld [smem:[#allocation0]]
  $region30: #{tpu_custom_call.1} parent=0
    _
  %s6 = ssub.s32 1, %s4
  %s7 = scalar_select 0, %s6, %s4
  $region1: #{tpu_custom_call.1} parent=0
    #allocation2 [shape = 'u8[2048]{0}', space=smem, size = 0x800, scoped, tag = 'input window, operand 0, single buffered']
    #allocation3 [shape = 's32[1]{0}', space=sflag, size = 0x4, scoped, tag = 'scoped memory for tpu_custom_call.1']
    #allocation4 [shape = 's32[1]{0}', space=sflag, size = 0x4, scoped, tag = 'scoped memory for tpu_custom_call.1']
    #allocation5 [shape = 's32[1]{0}', space=sflag, size = 0x4, scoped, tag = 'scoped memory for tpu_custom_call.1']
    #allocation6 [shape = 'u8[512]{0}', space=smem, size = 0x200, scoped, tag = 'input window, operand 1, single buffered']
    #allocation7 [shape = 'u8[2048]{0}', space=vmem, size = 0x800, scoped, tag = 'output window, operand 0, single buffered']
    %8 = vsyncpa [#allocation4], 0
    %9 = vsyncpa [#allocation5], 0
    %10 = vsyncpa [#allocation3], 0
    // Predicated region
    $region2: #{tpu_custom_call.1} parent=1 // pred_check
      _
    $region3: #{tpu_custom_call.1} parent=1 // pred_check_branch
      %12 = sbr.rel (0) target = $region5
    $region4: #{tpu_custom_call.1} parent=1 // pred_region
      %s14 = ssub.s32 64, 64
      %15 = vsyncadd [#allocation4], %s14
      %18 = dma.hbm_to_smem %s0, 64, [#allocation2], [#allocation4]
    $region5: #{tpu_custom_call.1} parent=1 // pred_fallthru
      _
    // Predicated region
    $region6: #{tpu_custom_call.1} parent=1 // pred_check
      _
    $region7: #{tpu_custom_call.1} parent=1 // pred_check_branch
      %20 = sbr.rel (0) target = $region9
    $region8: #{tpu_custom_call.1} parent=1 // pred_region
      %s22 = ssub.s32 16, 16
      %23 = vsyncadd [#allocation5], %s22
      %s25 = sshll.u32 %s1, 4
      %s26 = int_to_ptr.vmem [resolvable:$true] %s25
      %28 = dma.vmem_to_smem %s26, 16, [#allocation6], [#allocation5]
    $region9: #{tpu_custom_call.1} parent=1 // pred_fallthru
      _
    // Predicated region
    $region10: #{tpu_custom_call.1} parent=1 // pred_check
      _
    $region11: #{tpu_custom_call.1} parent=1 // pred_check_branch
      %30 = sbr.rel (0) target = $region13
    $region12: #{tpu_custom_call.1} parent=1 // pred_region
      _
    $region13: #{tpu_custom_call.1} parent=1 // pred_fallthru
      _
    // Predicated region
    $region14: #{tpu_custom_call.1} parent=1 // pred_check
      _
    $region15: #{tpu_custom_call.1} parent=1 // pred_check_branch
      %32 = sbr.rel (0) target = $region17
    $region16: #{tpu_custom_call.1} parent=1 // pred_region
      %33 = dma.done [#allocation4], 64
    $region17: #{tpu_custom_call.1} parent=1 // pred_fallthru
      _
    // Predicated region
    $region18: #{tpu_custom_call.1} parent=1 // pred_check
      _
    $region19: #{tpu_custom_call.1} parent=1 // pred_check_branch
      %35 = sbr.rel (0) target = $region21
    $region20: #{tpu_custom_call.1} parent=1 // pred_region
      %36 = dma.done [#allocation5], 16
    $region21: #{tpu_custom_call.1} parent=1 // pred_fallthru
      _
    %37 = sfence
    %v38 = vld [vmem:[%s2] sm:$0xf]
    %s39 = sld [smem:[#allocation2]]
    %v40 = vstv %s39
    %v41 = vmul.f32 %v38, %v40
    %s42 = sld [smem:[#allocation2 + $0x1]]
    %v43 = vstv %s42
    %v44 = vmul.f32 %v38, %v43
    %v46 = vrot.slane %v44, 1
    %v48 = vadd.f32 %v41, %v46
    %s49 = sld [smem:[#allocation2 + $0x2]]
    %v50 = vstv %s49
    %v51 = vmul.f32 %v38, %v50
    %v53 = vrot.slane %v51, 2
    %v55 = vadd.f32 %v48, %v53
    %s56 = sld [smem:[#allocation2 + $0x3]]
    %v57 = vstv %s56
    %v58 = vmul.f32 %v38, %v57
    %v60 = vrot.slane %v58, 3
    %v62 = vadd.f32 %v55, %v60
    %s63 = sld [smem:[#allocation6]]
    %v64 = vstv %s63
    %v65 = vadd.f32 %v62, %v64
    %66 = vst [vmem:[#allocation7] sm:$0x1] %v65
    %s67 = sld [smem:[#allocation2 + $0x80]]
    %v68 = vstv %s67
    %v69 = vmul.f32 %v38, %v68
    %s70 = sld [smem:[#allocation2 + $0x81]]
    %v71 = vstv %s70
    %v72 = vmul.f32 %v38, %v71
    %v74 = vrot.slane %v72, 1
    %v76 = vadd.f32 %v69, %v74
    %s77 = sld [smem:[#allocation2 + $0x82]]
    %v78 = vstv %s77
    %v79 = vmul.f32 %v38, %v78
    %v81 = vrot.slane %v79, 2
    %v83 = vadd.f32 %v76, %v81
    %s84 = sld [smem:[#allocation2 + $0x83]]
    %v85 = vstv %s84
    %v86 = vmul.f32 %v38, %v85
    %v88 = vrot.slane %v86, 3
    %v90 = vadd.f32 %v83, %v88
    %s91 = sld [smem:[#allocation6 + $0x1]]
    %v92 = vstv %s91
    %v93 = vadd.f32 %v90, %v92
    %94 = vst [vmem:[#allocation7 + $0x1] sm:$0x1] %v93
    %s95 = sld [smem:[#allocation2 + $0x100]]
    %v96 = vstv %s95
    %v97 = vmul.f32 %v38, %v96
    %s98 = sld [smem:[#allocation2 + $0x101]]
    %v99 = vstv %s98
    %v100 = vmul.f32 %v38, %v99
    %v102 = vrot.slane %v100, 1
    %v104 = vadd.f32 %v97, %v102
    %s105 = sld [smem:[#allocation2 + $0x102]]
    %v106 = vstv %s105
    %v107 = vmul.f32 %v38, %v106
    %v109 = vrot.slane %v107, 2
    %v111 = vadd.f32 %v104, %v109
    %s112 = sld [smem:[#allocation2 + $0x103]]
    %v113 = vstv %s112
    %v114 = vmul.f32 %v38, %v113
    %v116 = vrot.slane %v114, 3
    %v118 = vadd.f32 %v111, %v116
    %s119 = sld [smem:[#allocation6 + $0x2]]
    %v120 = vstv %s119
    %v121 = vadd.f32 %v118, %v120
    %122 = vst [vmem:[#allocation7 + $0x2] sm:$0x1] %v121
    // Predicated region
    $region22: #{tpu_custom_call.1} parent=1 // pred_check
      _
    $region23: #{tpu_custom_call.1} parent=1 // pred_check_branch
      %124 = sbr.rel (0) target = $region25
    $region24: #{tpu_custom_call.1} parent=1 // pred_region
      %s126 = ssub.s32 64, 64
      %127 = vsyncadd [#allocation3], %s126
      %s129 = sshll.u32 [#allocation7], 4
      %s130 = int_to_ptr.vmem [resolvable:$true] %s129
      %132 = dma.vmem_to_hbm [thread:$0]  %s130, 64, %s3, [#allocation3]
    $region25: #{tpu_custom_call.1} parent=1 // pred_fallthru
      _
    // Predicated region
    $region26: #{tpu_custom_call.1} parent=1 // pred_check
      _
    $region27: #{tpu_custom_call.1} parent=1 // pred_check_branch
      %134 = sbr.rel (0) target = $region29
    $region28: #{tpu_custom_call.1} parent=1 // pred_region
      %135 = dma.done [#allocation3], 64
    $region29: #{tpu_custom_call.1} parent=1 // pred_fallthru
      _
    %136 = vsyncpa [#allocation3], 1
    %137 = vsyncpa [#allocation4], 1
    %138 = vsyncpa [#allocation5], 1

</llo_original>
